<compile_context>
chip_gen: v5e
topology: v5e:2x2
jax: 0.10.0
libtpu: 0.0.40
codegen_flags: <defaults>
</compile_context>

<pallas_src>
import jax
import jax.numpy as jnp
from jax.experimental import pallas as pl
from jax.experimental.pallas import tpu as pltpu

HIDDEN = 256


def _round_up(x, m):
    return ((x + m - 1) // m) * m


def _cdiv(a, b):
    return (a + b - 1) // b


def dueling_q_kernel(
    x_ref,                   # (TILE_B, in)     f32
    w1_ref, b1_ref,          # (in, 256) bf16,  (1, 256) f32
    w2_ref, b2_ref,          # (256, 256) bf16, (1, 256) f32
    wva1_ref, bva1_ref,      # fused value/adv hidden: (256, 512) bf16, (1, 512) f32
    wout_ref, bout_ref,      # fused output layer:     (512, A_pad) bf16, (1, A_pad) f32
    q_ref,                   # (TILE_B, A_pad)  f32
):
    # feature_layer: Linear -> ReLU -> Linear -> ReLU
    # bf16 operands at every MXU boundary, f32 accumulate; bias/ReLU stay f32.
    h = jnp.dot(x_ref[...].astype(jnp.bfloat16), w1_ref[...],
                preferred_element_type=jnp.float32) + b1_ref[...]
    h = jnp.maximum(h, 0.0)
    h = jnp.dot(h.astype(jnp.bfloat16), w2_ref[...],
                preferred_element_type=jnp.float32) + b2_ref[...]
    h = jnp.maximum(h, 0.0)

    # fused first layers of the value & advantage streams: one (B,256)x(256,512) pass
    va = jnp.dot(h.astype(jnp.bfloat16), wva1_ref[...],
                 preferred_element_type=jnp.float32) + bva1_ref[...]
    va = jnp.maximum(va, 0.0)

    # value head + centered advantage head + final add, all folded into one
    # (B,512)x(512,A_pad) MXU pass (no XLU reduce, no slicing, no broadcast add).
    q_ref[...] = jnp.dot(va.astype(jnp.bfloat16), wout_ref[...],
                         preferred_element_type=jnp.float32) + bout_ref[...]


def dueling_q_forward(x, params, *, tile_b_max=256):
    """x: (B, input_size) float32. params: dict from init_params (PyTorch semantics)."""
    B, in_size = x.shape
    A = params["wa2"].shape[1]

    # ---- host-side weight prep (cheap; cacheable at init) --------------------
    wva1 = jnp.concatenate([params["wv1"], params["wa1"]], axis=1)        # (256, 512)
    bva1 = jnp.concatenate([params["bv1"], params["ba1"]], axis=1)        # (1, 512)

    # fold the advantage mean into the output layer (exact algebra), THEN zero-pad
    # to a lane-dense multiple of 128 (padded cols compute exactly v, sliced away).
    wa2_f = params["wa2"] - jnp.mean(params["wa2"], axis=1, keepdims=True)
    ba2_f = params["ba2"] - jnp.mean(params["ba2"], axis=1, keepdims=True)
    A_pad = _round_up(A, 128)
    if A_pad != A:
        wa2_f = jnp.pad(wa2_f, ((0, 0), (0, A_pad - A)))
        ba2_f = jnp.pad(ba2_f, ((0, 0), (0, A_pad - A)))

    # fold the value head (256->1) and the final `v + a_centered` into one matmul.
    wout = jnp.concatenate(
        [jnp.broadcast_to(params["wv2"], (HIDDEN, A_pad)), wa2_f], axis=0)  # (512, A_pad)
    bout = params["bv2"] + ba2_f                                            # (1, A_pad)

    # bf16 MXU operands (accumulation stays f32 in-kernel); biases stay f32.
    w1 = params["w1"].astype(jnp.bfloat16)
    w2 = params["w2"].astype(jnp.bfloat16)
    wva1 = wva1.astype(jnp.bfloat16)
    wout = wout.astype(jnp.bfloat16)
    b1, b2 = params["b1"], params["b2"]

    # ---- batch tiling --------------------------------------------------------
    # Large tiles amortize per-grid-step overhead and fill the MXU M dim, but keep
    # >= 2 tiles when B allows so v7x's two TensorCores both get work.
    tile_b = min(tile_b_max, max(8, _round_up(_cdiv(B, 2), 8)))
    B_pad = _round_up(B, tile_b)
    x_p = jnp.pad(x, ((0, B_pad - B), (0, 0))) if B_pad != B else x
    grid = (B_pad // tile_b,)

    def resident(arr):
        # whole-array block, constant index -> stays in VMEM across batch tiles.
        return pl.BlockSpec(arr.shape, lambda i: (0, 0))

    in_specs = [
        pl.BlockSpec((tile_b, in_size), lambda i: (i, 0)),   # x: batch-tiled
        resident(w1), resident(b1),
        resident(w2), resident(b2),
        resident(wva1), resident(bva1),
        resident(wout), resident(bout),
    ]
    out_specs = pl.BlockSpec((tile_b, A_pad), lambda i: (i, 0))

    flops = 2 * B_pad * (in_size * HIDDEN
                         + HIDDEN * HIDDEN
                         + HIDDEN * 2 * HIDDEN
                         + 2 * HIDDEN * A_pad)
    weight_arrays = (w1, b1, w2, b2, wva1, bva1, wout, bout)
    bytes_accessed = (x_p.size * x_p.dtype.itemsize
                      + sum(a.size * a.dtype.itemsize for a in weight_arrays)
                      + B_pad * A_pad * 4)

    # VMEM at tile_b<=1024 is a few MiB total -> default scoped limit is plenty,
    # even on v7x; set vmem_limit_bytes only if tile_b is pushed past ~2048.
    q_pad = pl.pallas_call(
        dueling_q_kernel,
        out_shape=jax.ShapeDtypeStruct((B_pad, A_pad), jnp.float32),
        grid=grid,
        in_specs=in_specs,
        out_specs=out_specs,
        compiler_params=pltpu.CompilerParams(dimension_semantics=("parallel",)),
        cost_estimate=pl.CostEstimate(
            flops=flops, transcendentals=0, bytes_accessed=bytes_accessed),
    )(x_p, w1, b1, w2, b2, wva1, bva1, wout, bout)

    return q_pad[:B, :A]


def init_params(key, input_size, output_size):
    """Deterministic synthetic parameter init (PyTorch-like uniform fan-in scaling).

    Weights are stored (in_features, out_features) so the kernel does x @ W + b,
    which matches PyTorch's x @ W.T + b with W=(out, in).
    """
    def linear(key, fan_in, fan_out):
        kw, kb = jax.random.split(key)
        bound = 1.0 / jnp.sqrt(fan_in)
        w = jax.random.uniform(kw, (fan_in, fan_out), jnp.float32, -bound, bound)
        b = jax.random.uniform(kb, (1, fan_out), jnp.float32, -bound, bound)
        return w, b

    keys = jax.random.split(key, 6)
    w1, b1 = linear(keys[0], input_size, HIDDEN)
    w2, b2 = linear(keys[1], HIDDEN, HIDDEN)
    wv1, bv1 = linear(keys[2], HIDDEN, HIDDEN)
    wv2, bv2 = linear(keys[3], HIDDEN, 1)
    wa1, ba1 = linear(keys[4], HIDDEN, HIDDEN)
    wa2, ba2 = linear(keys[5], HIDDEN, output_size)
    return dict(
        w1=w1, b1=b1, w2=w2, b2=b2,
        wv1=wv1, bv1=bv1, wv2=wv2, bv2=bv2,
        wa1=wa1, ba1=ba1, wa2=wa2, ba2=ba2,
    )


def reference_forward(x, p):
    """Plain-JAX f32 reference replicating the PyTorch module semantics (unfused params)."""
    h = jnp.maximum(x @ p["w1"] + p["b1"], 0.0)
    h = jnp.maximum(h @ p["w2"] + p["b2"], 0.0)
    v = jnp.maximum(h @ p["wv1"] + p["bv1"], 0.0) @ p["wv2"] + p["bv2"]
    a = jnp.maximum(h @ p["wa1"] + p["ba1"], 0.0) @ p["wa2"] + p["ba2"]
    return v + (a - jnp.mean(a, axis=1, keepdims=True))


if __name__ == "__main__":
    key = jax.random.PRNGKey(0)
    k_x, k_p = jax.random.split(key)

    batch = 2
    input_size = 16
    output_size = 8

    x = jax.random.normal(k_x, (batch, input_size), dtype=jnp.float32)
    params = init_params(k_p, input_size, output_size)

    q = dueling_q_forward(x, params)
    q = jax.block_until_ready(q)

    q_ref = reference_forward(x, params)
    assert q.shape == (batch, output_size)
    # bf16 MXU operands (f32 accumulate) -> loosen tolerance vs the f32 reference.
    assert jnp.allclose(q, q_ref, atol=3e-2, rtol=3e-2), (
        "mismatch vs reference, max abs err = "
        f"{float(jnp.max(jnp.abs(q - q_ref)))}")

    print("KERNEL_OK")
</pallas_src>

<mosaic_0001>
module attributes {stable_mosaic.version = 11 : i64} {
  func.func @dueling_q_kernel(%arg0: i32, %arg1: memref<8x16xf32, #tpu.memory_space<vmem>>, %arg2: memref<16x256xbf16, #tpu.memory_space<vmem>>, %arg3: memref<1x256xf32, #tpu.memory_space<vmem>>, %arg4: memref<256x256xbf16, #tpu.memory_space<vmem>>, %arg5: memref<1x256xf32, #tpu.memory_space<vmem>>, %arg6: memref<256x512xbf16, #tpu.memory_space<vmem>>, %arg7: memref<1x512xf32, #tpu.memory_space<vmem>>, %arg8: memref<512x128xbf16, #tpu.memory_space<vmem>>, %arg9: memref<1x128xf32, #tpu.memory_space<vmem>>, %arg10: memref<8x128xf32, #tpu.memory_space<vmem>>) attributes {dimension_semantics = [#tpu.dimension_semantics<parallel>], iteration_bounds = array<i64: 1>, scalar_prefetch = 0 : i64, scratch_operands = 0 : i64, tpu.core_type = #tpu.core_type<tc>, window_params = [{transform_indices = @transform_0, window_bounds = array<i64: 8, 16>}, {pipeline_mode = #tpu.pipeline_mode<synchronous>, transform_indices = @transform_1, window_bounds = array<i64: 16, 256>}, {pipeline_mode = #tpu.pipeline_mode<synchronous>, transform_indices = @transform_2, window_bounds = array<i64: 1, 256>}, {pipeline_mode = #tpu.pipeline_mode<synchronous>, transform_indices = @transform_3, window_bounds = array<i64: 256, 256>}, {pipeline_mode = #tpu.pipeline_mode<synchronous>, transform_indices = @transform_4, window_bounds = array<i64: 1, 256>}, {pipeline_mode = #tpu.pipeline_mode<synchronous>, transform_indices = @transform_5, window_bounds = array<i64: 256, 512>}, {pipeline_mode = #tpu.pipeline_mode<synchronous>, transform_indices = @transform_6, window_bounds = array<i64: 1, 512>}, {pipeline_mode = #tpu.pipeline_mode<synchronous>, transform_indices = @transform_7, window_bounds = array<i64: 512, 128>}, {pipeline_mode = #tpu.pipeline_mode<synchronous>, transform_indices = @transform_8, window_bounds = array<i64: 1, 128>}, {transform_indices = @transform_9, window_bounds = array<i64: 8, 128>}]} {
    %c0 = arith.constant 0 : index
    %c0_0 = arith.constant 0 : index
    %0 = vector.load %arg1[%c0, %c0_0] : memref<8x16xf32, #tpu.memory_space<vmem>>, vector<8x16xf32>
    %1 = arith.truncf %0 : vector<8x16xf32> to vector<8x16xbf16>
    %c0_1 = arith.constant 0 : index
    %c0_2 = arith.constant 0 : index
    %2 = vector.load %arg2[%c0_1, %c0_2] : memref<16x256xbf16, #tpu.memory_space<vmem>>, vector<16x256xbf16>
    %cst = arith.constant dense<0.000000e+00> : vector<8x256xf32>
    %3 = tpu.matmul %1, %2, %cst {dimension_numbers = #tpu.dot_dimension_numbers<[1], [0], [0], [1], [0, 0, 1, 1], [], []>} : vector<8x16xbf16>, vector<16x256xbf16>, vector<8x256xf32> -> vector<8x256xf32>
    %c0_3 = arith.constant 0 : index
    %c0_4 = arith.constant 0 : index
    %4 = vector.load %arg3[%c0_3, %c0_4] : memref<1x256xf32, #tpu.memory_space<vmem>>, vector<1x256xf32>
    %5 = vector.broadcast %4 : vector<1x256xf32> to vector<8x256xf32>
    %6 = arith.addf %3, %5 : vector<8x256xf32>
    %cst_5 = arith.constant 0.000000e+00 : f32
    %7 = vector.broadcast %cst_5 : f32 to vector<8x256xf32>
    %8 = arith.maximumf %6, %7 : vector<8x256xf32>
    %9 = arith.truncf %8 : vector<8x256xf32> to vector<8x256xbf16>
    %c0_6 = arith.constant 0 : index
    %c0_7 = arith.constant 0 : index
    %10 = vector.load %arg4[%c0_6, %c0_7] : memref<256x256xbf16, #tpu.memory_space<vmem>>, vector<256x256xbf16>
    %cst_8 = arith.constant dense<0.000000e+00> : vector<8x256xf32>
    %11 = tpu.matmul %9, %10, %cst_8 {dimension_numbers = #tpu.dot_dimension_numbers<[1], [0], [0], [1], [0, 0, 1, 1], [], []>} : vector<8x256xbf16>, vector<256x256xbf16>, vector<8x256xf32> -> vector<8x256xf32>
    %c0_9 = arith.constant 0 : index
    %c0_10 = arith.constant 0 : index
    %12 = vector.load %arg5[%c0_9, %c0_10] : memref<1x256xf32, #tpu.memory_space<vmem>>, vector<1x256xf32>
    %13 = vector.broadcast %12 : vector<1x256xf32> to vector<8x256xf32>
    %14 = arith.addf %11, %13 : vector<8x256xf32>
    %cst_11 = arith.constant 0.000000e+00 : f32
    %15 = vector.broadcast %cst_11 : f32 to vector<8x256xf32>
    %16 = arith.maximumf %14, %15 : vector<8x256xf32>
    %17 = arith.truncf %16 : vector<8x256xf32> to vector<8x256xbf16>
    %c0_12 = arith.constant 0 : index
    %c0_13 = arith.constant 0 : index
    %18 = vector.load %arg6[%c0_12, %c0_13] : memref<256x512xbf16, #tpu.memory_space<vmem>>, vector<256x512xbf16>
    %cst_14 = arith.constant dense<0.000000e+00> : vector<8x512xf32>
    %19 = tpu.matmul %17, %18, %cst_14 {dimension_numbers = #tpu.dot_dimension_numbers<[1], [0], [0], [1], [0, 0, 1, 1], [], []>} : vector<8x256xbf16>, vector<256x512xbf16>, vector<8x512xf32> -> vector<8x512xf32>
    %c0_15 = arith.constant 0 : index
    %c0_16 = arith.constant 0 : index
    %20 = vector.load %arg7[%c0_15, %c0_16] : memref<1x512xf32, #tpu.memory_space<vmem>>, vector<1x512xf32>
    %21 = vector.broadcast %20 : vector<1x512xf32> to vector<8x512xf32>
    %22 = arith.addf %19, %21 : vector<8x512xf32>
    %cst_17 = arith.constant 0.000000e+00 : f32
    %23 = vector.broadcast %cst_17 : f32 to vector<8x512xf32>
    %24 = arith.maximumf %22, %23 : vector<8x512xf32>
    %25 = arith.truncf %24 : vector<8x512xf32> to vector<8x512xbf16>
    %c0_18 = arith.constant 0 : index
    %c0_19 = arith.constant 0 : index
    %26 = vector.load %arg8[%c0_18, %c0_19] : memref<512x128xbf16, #tpu.memory_space<vmem>>, vector<512x128xbf16>
    %cst_20 = arith.constant dense<0.000000e+00> : vector<8x128xf32>
    %27 = tpu.matmul %25, %26, %cst_20 {dimension_numbers = #tpu.dot_dimension_numbers<[1], [0], [0], [1], [0, 0, 1, 1], [], []>} : vector<8x512xbf16>, vector<512x128xbf16>, vector<8x128xf32> -> vector<8x128xf32>
    %c0_21 = arith.constant 0 : index
    %c0_22 = arith.constant 0 : index
    %28 = vector.load %arg9[%c0_21, %c0_22] : memref<1x128xf32, #tpu.memory_space<vmem>>, vector<1x128xf32>
    %29 = vector.broadcast %28 : vector<1x128xf32> to vector<8x128xf32>
    %30 = arith.addf %27, %29 : vector<8x128xf32>
    %c0_23 = arith.constant 0 : index
    %c0_24 = arith.constant 0 : index
    %31 = vector.load %arg10[%c0_23, %c0_24] : memref<8x128xf32, #tpu.memory_space<vmem>>, vector<8x128xf32>
    tpu.vector_store %arg10[%c0_23, %c0_24], %30 {strides = array<i32>} : memref<8x128xf32, #tpu.memory_space<vmem>>, vector<8x128xf32>,
    return
  }
  func.func @transform_0(%arg0: i32) -> (i32, i32) {
    %c0_i32 = arith.constant 0 : i32
    %c0_i32_0 = arith.constant 0 : i32
    return %arg0, %c0_i32 : i32, i32
  }
  func.func @transform_1(%arg0: i32) -> (i32, i32) {
    %c0_i32 = arith.constant 0 : i32
    %c0_i32_0 = arith.constant 0 : i32
    %c0_i32_1 = arith.constant 0 : i32
    return %c0_i32, %c0_i32_0 : i32, i32
  }
  func.func @transform_2(%arg0: i32) -> (i32, i32) {
    %c0_i32 = arith.constant 0 : i32
    %c0_i32_0 = arith.constant 0 : i32
    %c0_i32_1 = arith.constant 0 : i32
    return %c0_i32, %c0_i32_0 : i32, i32
  }
  func.func @transform_3(%arg0: i32) -> (i32, i32) {
    %c0_i32 = arith.constant 0 : i32
    %c0_i32_0 = arith.constant 0 : i32
    %c0_i32_1 = arith.constant 0 : i32
    return %c0_i32, %c0_i32_0 : i32, i32
  }
  func.func @transform_4(%arg0: i32) -> (i32, i32) {
    %c0_i32 = arith.constant 0 : i32
    %c0_i32_0 = arith.constant 0 : i32
    %c0_i32_1 = arith.constant 0 : i32
    return %c0_i32, %c0_i32_0 : i32, i32
  }
  func.func @transform_5(%arg0: i32) -> (i32, i32) {
    %c0_i32 = arith.constant 0 : i32
    %c0_i32_0 = arith.constant 0 : i32
    %c0_i32_1 = arith.constant 0 : i32
    return %c0_i32, %c0_i32_0 : i32, i32
  }
  func.func @transform_6(%arg0: i32) -> (i32, i32) {
    %c0_i32 = arith.constant 0 : i32
    %c0_i32_0 = arith.constant 0 : i32
    %c0_i32_1 = arith.constant 0 : i32
    return %c0_i32, %c0_i32_0 : i32, i32
  }
  func.func @transform_7(%arg0: i32) -> (i32, i32) {
    %c0_i32 = arith.constant 0 : i32
    %c0_i32_0 = arith.constant 0 : i32
    %c0_i32_1 = arith.constant 0 : i32
    return %c0_i32, %c0_i32_0 : i32, i32
  }
  func.func @transform_8(%arg0: i32) -> (i32, i32) {
    %c0_i32 = arith.constant 0 : i32
    %c0_i32_0 = arith.constant 0 : i32
    %c0_i32_1 = arith.constant 0 : i32
    return %c0_i32, %c0_i32_0 : i32, i32
  }
  func.func @transform_9(%arg0: i32) -> (i32, i32) {
    %c0_i32 = arith.constant 0 : i32
    %c0_i32_0 = arith.constant 0 : i32
    return %arg0, %c0_i32 : i32, i32
  }
}

</mosaic_0001>

<llo_original>
// kernel: tpu_custom_call.1
$region0: #{tpu_custom_call.1}
  #allocation0 [shape = 'u32[]', space=smem, size = 0x4, offset = 0x4, fixed_abs, tag = 'smem constant byte address 0x4 - core index']
  #allocation1 [shape = 'u32[72,128]{1,0:T(1,128)}', space=vmem, size = 0x9000, scoped, tag = 'internal scratch']
  %s0 = inlined_call_operand.hbm [shape: f32[8,16], index: 0, kind: input, shape index: {}]
  %s1 = inlined_call_operand.hbm [shape: bf16[16,256], index: 1, kind: input, shape index: {}]
  %s2 = inlined_call_operand.hbm [shape: f32[1,256], index: 2, kind: input, shape index: {}]
  %s3 = inlined_call_operand.hbm [shape: bf16[256,256], index: 3, kind: input, shape index: {}]
  %s4 = inlined_call_operand.hbm [shape: f32[1,256], index: 4, kind: input, shape index: {}]
  %s5 = inlined_call_operand.hbm [shape: bf16[256,512], index: 5, kind: input, shape index: {}]
  %s6 = inlined_call_operand.vmem [shape: f32[1,512], index: 6, kind: input, shape index: {}]
  %s7 = inlined_call_operand.hbm [shape: bf16[512,128], index: 7, kind: input, shape index: {}]
  %s8 = inlined_call_operand.vmem [shape: f32[1,128], index: 8, kind: input, shape index: {}]
  %s9 = inlined_call_operand.hbm [shape: f32[8,128], index: 9, kind: output, shape index: {}]
  %s10 = sld [smem:[#allocation0]]
  $region74: #{tpu_custom_call.1} parent=0
    _
  %s12 = ssub.s32 1, %s10
  %s13 = scalar_select 0, %s12, %s10
  $region1: #{tpu_custom_call.1} parent=0
    #allocation2 [shape = 'u8[4096]{0}', space=vmem, size = 0x1000, scoped, tag = 'input window, operand 0, single buffered']
    #allocation3 [shape = 's32[1]{0}', space=sflag, size = 0x4, scoped, tag = 'scoped memory for tpu_custom_call.1']
    #allocation4 [shape = 's32[1]{0}', space=sflag, size = 0x4, scoped, tag = 'scoped memory for tpu_custom_call.1']
    #allocation5 [shape = 'u8[8192]{0}', space=vmem, size = 0x2000, scoped, tag = 'input window, operand 1, single buffered']
    #allocation6 [shape = 's32[1]{0}', space=sflag, size = 0x4, scoped, tag = 'scoped memory for tpu_custom_call.1']
    #allocation7 [shape = 'u8[1024]{0}', space=vmem, size = 0x400, scoped, tag = 'input window, operand 2, single buffered']
    #allocation8 [shape = 'u8[131072]{0}', space=vmem, size = 0x20000, scoped, tag = 'input window, operand 3, single buffered']
    #allocation9 [shape = 's32[1]{0}', space=sflag, size = 0x4, scoped, tag = 'scoped memory for tpu_custom_call.1']
    #allocation10 [shape = 'u8[1024]{0}', space=vmem, size = 0x400, scoped, tag = 'input window, operand 4, single buffered']
    #allocation11 [shape = 'u8[262144]{0}', space=vmem, size = 0x40000, scoped, tag = 'input window, operand 5, single buffered']
    #allocation12 [shape = 's32[1]{0}', space=sflag, size = 0x4, scoped, tag = 'scoped memory for tpu_custom_call.1']
    #allocation13 [shape = 'u8[131072]{0}', space=vmem, size = 0x20000, scoped, tag = 'input window, operand 7, single buffered']
    #allocation14 [shape = 'u8[4096]{0}', space=vmem, size = 0x1000, scoped, tag = 'output window, operand 0, single buffered']
    %14 = vsyncpa [#allocation3], 0
    %15 = vsyncpa [#allocation6], 0
    %16 = vsyncpa [#allocation9], 0
    %17 = vsyncpa [#allocation12], 0
    %18 = vsyncpa [#allocation4], 0
    // Predicated region
    $region2: #{tpu_custom_call.1} parent=1 // pred_check
      _
    $region3: #{tpu_custom_call.1} parent=1 // pred_check_branch
      %20 = sbr.rel (0) target = $region5
    $region4: #{tpu_custom_call.1} parent=1 // pred_region
      %22 = vsyncadd [#allocation3], 0
      %s24 = sshll.u32 %s0, 4
      %s25 = int_to_ptr.hbm [resolvable:$true] %s24
      %s26 = sshll.u32 [#allocation2], 4
      %s27 = int_to_ptr.vmem [resolvable:$true] %s26
      %29 = dma.hbm_to_vmem [thread:$0]  %s25, 128, %s27, [#allocation3]
    $region5: #{tpu_custom_call.1} parent=1 // pred_fallthru
      _
    // Predicated region
    $region6: #{tpu_custom_call.1} parent=1 // pred_check
      _
    $region7: #{tpu_custom_call.1} parent=1 // pred_check_branch
      %31 = sbr.rel (0) target = $region9
    $region8: #{tpu_custom_call.1} parent=1 // pred_region
      %33 = vsyncadd [#allocation6], 0
      %s34 = sshll.u32 %s1, 4
      %s35 = int_to_ptr.hbm [resolvable:$true] %s34
      %s36 = sshll.u32 [#allocation5], 4
      %s37 = int_to_ptr.vmem [resolvable:$true] %s36
      %42 = dma.hbm_to_vmem [thread:$0]  %s35, 256, %s37, [#allocation6], 128, 128, 8
    $region9: #{tpu_custom_call.1} parent=1 // pred_fallthru
      _
    // Predicated region
    $region10: #{tpu_custom_call.1} parent=1 // pred_check
      _
    $region11: #{tpu_custom_call.1} parent=1 // pred_check_branch
      %44 = sbr.rel (0) target = $region13
    $region12: #{tpu_custom_call.1} parent=1 // pred_region
      %46 = vsyncadd [#allocation6], 0
      %s48 = sshll.u32 %s2, 4
      %s49 = int_to_ptr.hbm [resolvable:$true] %s48
      %s50 = sshll.u32 [#allocation7], 4
      %s51 = int_to_ptr.vmem [resolvable:$true] %s50
      %53 = dma.hbm_to_vmem [thread:$0]  %s49, 32, %s51, [#allocation6]
    $region13: #{tpu_custom_call.1} parent=1 // pred_fallthru
      _
    // Predicated region
    $region14: #{tpu_custom_call.1} parent=1 // pred_check
      _
    $region15: #{tpu_custom_call.1} parent=1 // pred_check_branch
      %55 = sbr.rel (0) target = $region17
    $region16: #{tpu_custom_call.1} parent=1 // pred_region
      %57 = vsyncadd [#allocation9], 0
      %s58 = sshll.u32 %s3, 4
      %s59 = int_to_ptr.hbm [resolvable:$true] %s58
      %s60 = sshll.u32 [#allocation8], 4
      %s61 = int_to_ptr.vmem [resolvable:$true] %s60
      %66 = dma.hbm_to_vmem [thread:$0]  %s59, 4096, %s61, [#allocation9], 128, 128, 8
    $region17: #{tpu_custom_call.1} parent=1 // pred_fallthru
      _
    // Predicated region
    $region18: #{tpu_custom_call.1} parent=1 // pred_check
      _
    $region19: #{tpu_custom_call.1} parent=1 // pred_check_branch
      %68 = sbr.rel (0) target = $region21
    $region20: #{tpu_custom_call.1} parent=1 // pred_region
      %70 = vsyncadd [#allocation9], 0
      %s72 = sshll.u32 %s4, 4
      %s73 = int_to_ptr.hbm [resolvable:$true] %s72
      %s74 = sshll.u32 [#allocation10], 4
      %s75 = int_to_ptr.vmem [resolvable:$true] %s74
      %77 = dma.hbm_to_vmem [thread:$0]  %s73, 32, %s75, [#allocation9]
    $region21: #{tpu_custom_call.1} parent=1 // pred_fallthru
      _
    // Predicated region
    $region22: #{tpu_custom_call.1} parent=1 // pred_check
      _
    $region23: #{tpu_custom_call.1} parent=1 // pred_check_branch
      %79 = sbr.rel (0) target = $region25
    $region24: #{tpu_custom_call.1} parent=1 // pred_region
      %81 = vsyncadd [#allocation12], 0
      %s82 = sshll.u32 %s5, 4
      %s83 = int_to_ptr.hbm [resolvable:$true] %s82
      %s84 = sshll.u32 [#allocation11], 4
      %s85 = int_to_ptr.vmem [resolvable:$true] %s84
      %90 = dma.hbm_to_vmem [thread:$0]  %s83, 8192, %s85, [#allocation12], 256, 256, 16
    $region25: #{tpu_custom_call.1} parent=1 // pred_fallthru
      _
    // Predicated region
    $region26: #{tpu_custom_call.1} parent=1 // pred_check
      _
    $region27: #{tpu_custom_call.1} parent=1 // pred_check_branch
      %92 = sbr.rel (0) target = $region29
    $region28: #{tpu_custom_call.1} parent=1 // pred_region
      _
    $region29: #{tpu_custom_call.1} parent=1 // pred_fallthru
      _
    // Predicated region
    $region30: #{tpu_custom_call.1} parent=1 // pred_check
      _
    $region31: #{tpu_custom_call.1} parent=1 // pred_check_branch
      %94 = sbr.rel (0) target = $region33
    $region32: #{tpu_custom_call.1} parent=1 // pred_region
      %96 = vsyncadd [#allocation12], 0
      %s97 = sshll.u32 %s7, 4
      %s98 = int_to_ptr.hbm [resolvable:$true] %s97
      %s99 = sshll.u32 [#allocation13], 4
      %s100 = int_to_ptr.vmem [resolvable:$true] %s99
      %105 = dma.hbm_to_vmem [thread:$0]  %s98, 4096, %s100, [#allocation12], 64, 64, 4
    $region33: #{tpu_custom_call.1} parent=1 // pred_fallthru
      _
    // Predicated region
    $region34: #{tpu_custom_call.1} parent=1 // pred_check
      _
    $region35: #{tpu_custom_call.1} parent=1 // pred_check_branch
      %107 = sbr.rel (0) target = $region37
    $region36: #{tpu_custom_call.1} parent=1 // pred_region
      _
    $region37: #{tpu_custom_call.1} parent=1 // pred_fallthru
      _
    // Predicated region
    $region38: #{tpu_custom_call.1} parent=1 // pred_check
      _
    $region39: #{tpu_custom_call.1} parent=1 // pred_check_branch
      %109 = sbr.rel (0) target = $region41
    $region40: #{tpu_custom_call.1} parent=1 // pred_region
      %111 = dma.done [#allocation3], 128
    $region41: #{tpu_custom_call.1} parent=1 // pred_fallthru
      _
    // Predicated region
    $region42: #{tpu_custom_call.1} parent=1 // pred_check
      _
    $region43: #{tpu_custom_call.1} parent=1 // pred_check_branch
      %113 = sbr.rel (0) target = $region45
    $region44: #{tpu_custom_call.1} parent=1 // pred_region
      %115 = dma.done [#allocation6], 256
    $region45: #{tpu_custom_call.1} parent=1 // pred_fallthru
      _
    // Predicated region
    $region46: #{tpu_custom_call.1} parent=1 // pred_check
      _
    $region47: #{tpu_custom_call.1} parent=1 // pred_check_branch
      %117 = sbr.rel (0) target = $region49
    $region48: #{tpu_custom_call.1} parent=1 // pred_region
      %119 = dma.done [#allocation6], 32
    $region49: #{tpu_custom_call.1} parent=1 // pred_fallthru
      _
    // Predicated region
    $region50: #{tpu_custom_call.1} parent=1 // pred_check
      _
    $region51: #{tpu_custom_call.1} parent=1 // pred_check_branch
      %121 = sbr.rel (0) target = $region53
    $region52: #{tpu_custom_call.1} parent=1 // pred_region
      %123 = dma.done [#allocation9], 4096
    $region53: #{tpu_custom_call.1} parent=1 // pred_fallthru
      _
    // Predicated region
    $region54: #{tpu_custom_call.1} parent=1 // pred_check
      _
    $region55: #{tpu_custom_call.1} parent=1 // pred_check_branch
      %125 = sbr.rel (0) target = $region57
    $region56: #{tpu_custom_call.1} parent=1 // pred_region
      %127 = dma.done [#allocation9], 32
    $region57: #{tpu_custom_call.1} parent=1 // pred_fallthru
      _
    // Predicated region
    $region58: #{tpu_custom_call.1} parent=1 // pred_check
      _
    $region59: #{tpu_custom_call.1} parent=1 // pred_check_branch
      %129 = sbr.rel (0) target = $region61
    $region60: #{tpu_custom_call.1} parent=1 // pred_region
      %131 = dma.done [#allocation12], 8192
    $region61: #{tpu_custom_call.1} parent=1 // pred_fallthru
      _
    // Predicated region
    $region62: #{tpu_custom_call.1} parent=1 // pred_check
      _
    $region63: #{tpu_custom_call.1} parent=1 // pred_check_branch
      %133 = sbr.rel (0) target = $region65
    $region64: #{tpu_custom_call.1} parent=1 // pred_region
      %135 = dma.done [#allocation12], 4096
    $region65: #{tpu_custom_call.1} parent=1 // pred_fallthru
      _
    %v137 = vld [vmem:[#allocation2] sm:$0xff]
    %v138 = vpack.c.bf16 %v137, %v137
    %v139 = vld [vmem:[#allocation5] sm:$0xff]
    %v140 = vld [vmem:[#allocation5 + $0x8] sm:$0xff]
    %v141 = vld [vmem:[#allocation7] sm:$0x3]
    %v143 = vperm.slane %v141, 0
    %v144 = vperm.slane %v141, 1
    %v149 = vunpack.c.l.b16 %v139
    %v150 = vunpack.c.h.b16 %v139
    %v151 = vunpack.c.l.b16 %v140
    %v152 = vunpack.c.h.b16 %v140
    %v153 = vpack.c.b16 %v151, %v149
    %v154 = vpack.c.b16 %v152, %v150
    %vm157 = vcmask 130048
    %v159 = vsel %vm157, %v138, 0
    %161 = vmatpush.bf16.msra.mxu0 0
    %162 = vmatpush.bf16.msra.mxu0 0
    %163 = vmatpush.bf16.msra.mxu0 0
    %164 = vmatpush.bf16.msra.mxu0 0
    %165 = vmatpush.bf16.msra.mxu0 0
    %166 = vmatpush.bf16.msra.mxu0 0
    %167 = vmatpush.bf16.msra.mxu0 0
    %168 = vmatpush.bf16.msra.mxu0 %v153
    %169 = vmatmul.bf16.gmra.mxu0 %v159
    %v170 = vpop.f32.mrf.mxu0
    %v171 = vadd.f32 %v143, %v170
    %v172 = vpop.f32.mrf.mxu0
    %173 = vdwg.mxu0
    %174 = vmatpush.bf16.msra.mxu0 0
    %175 = vmatpush.bf16.msra.mxu0 0
    %176 = vmatpush.bf16.msra.mxu0 0
    %177 = vmatpush.bf16.msra.mxu0 0
    %178 = vmatpush.bf16.msra.mxu0 0
    %179 = vmatpush.bf16.msra.mxu0 0
    %180 = vmatpush.bf16.msra.mxu0 0
    %181 = vmatpush.bf16.msra.mxu0 %v154
    %182 = vmatmul.bf16.gmra.mxu0 %v159
    %v183 = vpop.f32.mrf.mxu0
    %v184 = vadd.f32 %v144, %v183
    %v185 = vpop.f32.mrf.mxu0
    %186 = vdwg.mxu0
    %v187 = vmax.f32 %v171, 0.0
    %v188 = vmax.f32 %v184, 0.0
    %v189 = vpack.c.bf16 %v187, %v187
    %v190 = vpack.c.bf16 %v188, %v188
    %v191 = vld [vmem:[#allocation8] sm:$0xff]
    %v192 = vld [vmem:[#allocation8 + $0x8] sm:$0xff]
    %v193 = vld [vmem:[#allocation8 + $0x10] sm:$0xff]
    %v194 = vld [vmem:[#allocation8 + $0x18] sm:$0xff]
    %v195 = vld [vmem:[#allocation8 + $0x20] sm:$0xff]
    %v196 = vld [vmem:[#allocation8 + $0x28] sm:$0xff]
    %v197 = vld [vmem:[#allocation8 + $0x30] sm:$0xff]
    %v198 = vld [vmem:[#allocation8 + $0x38] sm:$0xff]
    %v199 = vld [vmem:[#allocation8 + $0x40] sm:$0xff]
    %v200 = vld [vmem:[#allocation8 + $0x48] sm:$0xff]
    %v201 = vld [vmem:[#allocation8 + $0x50] sm:$0xff]
    %v202 = vld [vmem:[#allocation8 + $0x58] sm:$0xff]
    %v203 = vld [vmem:[#allocation8 + $0x60] sm:$0xff]
    %v204 = vld [vmem:[#allocation8 + $0x68] sm:$0xff]
    %v205 = vld [vmem:[#allocation8 + $0x70] sm:$0xff]
    %v206 = vld [vmem:[#allocation8 + $0x78] sm:$0xff]
    %v207 = vld [vmem:[#allocation8 + $0x80] sm:$0xff]
    %v208 = vld [vmem:[#allocation8 + $0x88] sm:$0xff]
    %v209 = vld [vmem:[#allocation8 + $0x90] sm:$0xff]
    %v210 = vld [vmem:[#allocation8 + $0x98] sm:$0xff]
    %v211 = vld [vmem:[#allocation8 + $0xa0] sm:$0xff]
    %v212 = vld [vmem:[#allocation8 + $0xa8] sm:$0xff]
    %v213 = vld [vmem:[#allocation8 + $0xb0] sm:$0xff]
    %v214 = vld [vmem:[#allocation8 + $0xb8] sm:$0xff]
    %v215 = vld [vmem:[#allocation8 + $0xc0] sm:$0xff]
    %v216 = vld [vmem:[#allocation8 + $0xc8] sm:$0xff]
    %v217 = vld [vmem:[#allocation8 + $0xd0] sm:$0xff]
    %v218 = vld [vmem:[#allocation8 + $0xd8] sm:$0xff]
    %v219 = vld [vmem:[#allocation8 + $0xe0] sm:$0xff]
    %v220 = vld [vmem:[#allocation8 + $0xe8] sm:$0xff]
    %v221 = vld [vmem:[#allocation8 + $0xf0] sm:$0xff]
    %v222 = vld [vmem:[#allocation8 + $0xf8] sm:$0xff]
    %v223 = vld [vmem:[#allocation10] sm:$0x3]
    %v225 = vperm.slane %v223, 0
    %v226 = vperm.slane %v223, 1
    %v261 = vunpack.c.l.b16 %v191
    %v262 = vunpack.c.h.b16 %v191
    %v263 = vunpack.c.l.b16 %v192
    %v264 = vunpack.c.h.b16 %v192
    %v265 = vunpack.c.l.b16 %v193
    %v266 = vunpack.c.h.b16 %v193
    %v267 = vunpack.c.l.b16 %v194
    %v268 = vunpack.c.h.b16 %v194
    %v269 = vunpack.c.l.b16 %v195
    %v270 = vunpack.c.h.b16 %v195
    %v271 = vunpack.c.l.b16 %v196
    %v272 = vunpack.c.h.b16 %v196
    %v273 = vunpack.c.l.b16 %v197
    %v274 = vunpack.c.h.b16 %v197
    %v275 = vunpack.c.l.b16 %v198
    %v276 = vunpack.c.h.b16 %v198
    %v277 = vunpack.c.l.b16 %v199
    %v278 = vunpack.c.h.b16 %v199
    %v279 = vunpack.c.l.b16 %v200
    %v280 = vunpack.c.h.b16 %v200
    %v281 = vunpack.c.l.b16 %v201
    %v282 = vunpack.c.h.b16 %v201
    %v283 = vunpack.c.l.b16 %v202
    %v284 = vunpack.c.h.b16 %v202
    %v285 = vunpack.c.l.b16 %v203
    %v286 = vunpack.c.h.b16 %v203
    %v287 = vunpack.c.l.b16 %v204
    %v288 = vunpack.c.h.b16 %v204
    %v289 = vunpack.c.l.b16 %v205
    %v290 = vunpack.c.h.b16 %v205
    %v291 = vunpack.c.l.b16 %v206
    %v292 = vunpack.c.h.b16 %v206
    %v293 = vunpack.c.l.b16 %v207
    %v294 = vunpack.c.h.b16 %v207
    %v295 = vunpack.c.l.b16 %v208
    %v296 = vunpack.c.h.b16 %v208
    %v297 = vunpack.c.l.b16 %v209
    %v298 = vunpack.c.h.b16 %v209
    %v299 = vunpack.c.l.b16 %v210
    %v300 = vunpack.c.h.b16 %v210
    %v301 = vunpack.c.l.b16 %v211
    %v302 = vunpack.c.h.b16 %v211
    %v303 = vunpack.c.l.b16 %v212
    %v304 = vunpack.c.h.b16 %v212
    %v305 = vunpack.c.l.b16 %v213
    %v306 = vunpack.c.h.b16 %v213
    %v307 = vunpack.c.l.b16 %v214
    %v308 = vunpack.c.h.b16 %v214
    %v309 = vunpack.c.l.b16 %v215
    %v310 = vunpack.c.h.b16 %v215
    %v311 = vunpack.c.l.b16 %v216
    %v312 = vunpack.c.h.b16 %v216
    %v313 = vunpack.c.l.b16 %v217
    %v314 = vunpack.c.h.b16 %v217
    %v315 = vunpack.c.l.b16 %v218
    %v316 = vunpack.c.h.b16 %v218
    %v317 = vunpack.c.l.b16 %v219
    %v318 = vunpack.c.h.b16 %v219
    %v319 = vunpack.c.l.b16 %v220
    %v320 = vunpack.c.h.b16 %v220
    %v321 = vunpack.c.l.b16 %v221
    %v322 = vunpack.c.h.b16 %v221
    %v323 = vunpack.c.l.b16 %v222
    %v324 = vunpack.c.h.b16 %v222
    %v325 = vpack.c.b16 %v263, %v261
    %v326 = vpack.c.b16 %v264, %v262
    %v327 = vpack.c.b16 %v267, %v265
    %v328 = vpack.c.b16 %v268, %v266
    %v329 = vpack.c.b16 %v271, %v269
    %v330 = vpack.c.b16 %v272, %v270
    %v331 = vpack.c.b16 %v275, %v273
    %v332 = vpack.c.b16 %v276, %v274
    %v333 = vpack.c.b16 %v279, %v277
    %v334 = vpack.c.b16 %v280, %v278
    %v335 = vpack.c.b16 %v283, %v281
    %v336 = vpack.c.b16 %v284, %v282
    %v337 = vpack.c.b16 %v287, %v285
    %v338 = vpack.c.b16 %v288, %v286
    %v339 = vpack.c.b16 %v291, %v289
    %v340 = vpack.c.b16 %v292, %v290
    %v341 = vpack.c.b16 %v295, %v293
    %v342 = vpack.c.b16 %v296, %v294
    %v343 = vpack.c.b16 %v299, %v297
    %v344 = vpack.c.b16 %v300, %v298
    %v345 = vpack.c.b16 %v303, %v301
    %v346 = vpack.c.b16 %v304, %v302
    %v347 = vpack.c.b16 %v307, %v305
    %v348 = vpack.c.b16 %v308, %v306
    %v349 = vpack.c.b16 %v311, %v309
    %v350 = vpack.c.b16 %v312, %v310
    %v351 = vpack.c.b16 %v315, %v313
    %v352 = vpack.c.b16 %v316, %v314
    %v353 = vpack.c.b16 %v319, %v317
    %v354 = vpack.c.b16 %v320, %v318
    %v355 = vpack.c.b16 %v323, %v321
    %v356 = vpack.c.b16 %v324, %v322
    %389 = vmatpush.bf16.msra.mxu0 %v339
    %390 = vmatpush.bf16.msra.mxu0 %v337
    %391 = vmatpush.bf16.msra.mxu0 %v335
    %392 = vmatpush.bf16.msra.mxu0 %v333
    %393 = vmatpush.bf16.msra.mxu0 %v331
    %394 = vmatpush.bf16.msra.mxu0 %v329
    %395 = vmatpush.bf16.msra.mxu0 %v327
    %396 = vmatpush.bf16.msra.mxu0 %v325
    %397 = vmatmul.bf16.gmra.mxu0 %v189
    %v398 = vpop.f32.mrf.mxu0
    %v399 = vadd.f32 %v225, %v398
    %v400 = vpop.f32.mrf.mxu0
    %401 = vdwg.mxu0
    %402 = vmatpush.bf16.msra.mxu0 %v355
    %403 = vmatpush.bf16.msra.mxu0 %v353
    %404 = vmatpush.bf16.msra.mxu0 %v351
    %405 = vmatpush.bf16.msra.mxu0 %v349
    %406 = vmatpush.bf16.msra.mxu0 %v347
    %407 = vmatpush.bf16.msra.mxu0 %v345
    %408 = vmatpush.bf16.msra.mxu0 %v343
    %409 = vmatpush.bf16.msra.mxu0 %v341
    %410 = vmatmul.bf16.gmra.mxu0 %v190
    %v411 = vpop.f32.mrf.mxu0
    %v412 = vadd.f32 %v399, %v411
    %v413 = vpop.f32.mrf.mxu0
    %414 = vdwg.mxu0
    %415 = vmatpush.bf16.msra.mxu0 %v340
    %416 = vmatpush.bf16.msra.mxu0 %v338
    %417 = vmatpush.bf16.msra.mxu0 %v336
    %418 = vmatpush.bf16.msra.mxu0 %v334
    %419 = vmatpush.bf16.msra.mxu0 %v332
    %420 = vmatpush.bf16.msra.mxu0 %v330
    %421 = vmatpush.bf16.msra.mxu0 %v328
    %422 = vmatpush.bf16.msra.mxu0 %v326
    %423 = vmatmul.bf16.gmra.mxu0 %v189
    %v424 = vpop.f32.mrf.mxu0
    %v425 = vadd.f32 %v226, %v424
    %v426 = vpop.f32.mrf.mxu0
    %427 = vdwg.mxu0
    %428 = vmatpush.bf16.msra.mxu0 %v356
    %429 = vmatpush.bf16.msra.mxu0 %v354
    %430 = vmatpush.bf16.msra.mxu0 %v352
    %431 = vmatpush.bf16.msra.mxu0 %v350
    %432 = vmatpush.bf16.msra.mxu0 %v348
    %433 = vmatpush.bf16.msra.mxu0 %v346
    %434 = vmatpush.bf16.msra.mxu0 %v344
    %435 = vmatpush.bf16.msra.mxu0 %v342
    %436 = vmatmul.bf16.gmra.mxu0 %v190
    %v437 = vpop.f32.mrf.mxu0
    %v438 = vadd.f32 %v425, %v437
    %v439 = vpop.f32.mrf.mxu0
    %440 = vdwg.mxu0
    %v441 = vmax.f32 %v412, 0.0
    %v442 = vmax.f32 %v438, 0.0
    %v443 = vpack.c.bf16 %v441, %v441
    %v444 = vpack.c.bf16 %v442, %v442
    %v445 = vld [vmem:[#allocation11] sm:$0xff]
    %v446 = vld [vmem:[#allocation11 + $0x8] sm:$0xff]
    %v447 = vld [vmem:[#allocation11 + $0x10] sm:$0xff]
    %v448 = vld [vmem:[#allocation11 + $0x18] sm:$0xff]
    %v449 = vld [vmem:[#allocation11 + $0x20] sm:$0xff]
    %v450 = vld [vmem:[#allocation11 + $0x28] sm:$0xff]
    %v451 = vld [vmem:[#allocation11 + $0x30] sm:$0xff]
    %v452 = vld [vmem:[#allocation11 + $0x38] sm:$0xff]
    %v453 = vld [vmem:[#allocation11 + $0x40] sm:$0xff]
    %v454 = vld [vmem:[#allocation11 + $0x48] sm:$0xff]
    %v455 = vld [vmem:[#allocation11 + $0x50] sm:$0xff]
    %v456 = vld [vmem:[#allocation11 + $0x58] sm:$0xff]
    %v457 = vld [vmem:[#allocation11 + $0x60] sm:$0xff]
    %v458 = vld [vmem:[#allocation11 + $0x68] sm:$0xff]
    %v459 = vld [vmem:[#allocation11 + $0x70] sm:$0xff]
    %v460 = vld [vmem:[#allocation11 + $0x78] sm:$0xff]
    %v461 = vld [vmem:[#allocation11 + $0x80] sm:$0xff]
    %v462 = vld [vmem:[#allocation11 + $0x88] sm:$0xff]
    %v463 = vld [vmem:[#allocation11 + $0x90] sm:$0xff]
    %v464 = vld [vmem:[#allocation11 + $0x98] sm:$0xff]
    %v465 = vld [vmem:[#allocation11 + $0xa0] sm:$0xff]
    %v466 = vld [vmem:[#allocation11 + $0xa8] sm:$0xff]
    %v467 = vld [vmem:[#allocation11 + $0xb0] sm:$0xff]
    %v468 = vld [vmem:[#allocation11 + $0xb8] sm:$0xff]
    %v469 = vld [vmem:[#allocation11 + $0xc0] sm:$0xff]
    %v470 = vld [vmem:[#allocation11 + $0xc8] sm:$0xff]
    %v471 = vld [vmem:[#allocation11 + $0xd0] sm:$0xff]
    %v472 = vld [vmem:[#allocation11 + $0xd8] sm:$0xff]
    %v473 = vld [vmem:[#allocation11 + $0xe0] sm:$0xff]
    %v474 = vld [vmem:[#allocation11 + $0xe8] sm:$0xff]
    %v475 = vld [vmem:[#allocation11 + $0xf0] sm:$0xff]
    %v476 = vld [vmem:[#allocation11 + $0xf8] sm:$0xff]
    %v477 = vld [vmem:[#allocation11 + $0x100] sm:$0xff]
    %v478 = vld [vmem:[#allocation11 + $0x108] sm:$0xff]
    %v479 = vld [vmem:[#allocation11 + $0x110] sm:$0xff]
    %v480 = vld [vmem:[#allocation11 + $0x118] sm:$0xff]
    %v481 = vld [vmem:[#allocation11 + $0x120] sm:$0xff]
    %v482 = vld [vmem:[#allocation11 + $0x128] sm:$0xff]
    %v483 = vld [vmem:[#allocation11 + $0x130] sm:$0xff]
    %v484 = vld [vmem:[#allocation11 + $0x138] sm:$0xff]
    %v485 = vld [vmem:[#allocation11 + $0x140] sm:$0xff]
    %v486 = vld [vmem:[#allocation11 + $0x148] sm:$0xff]
    %v487 = vld [vmem:[#allocation11 + $0x150] sm:$0xff]
    %v488 = vld [vmem:[#allocation11 + $0x158] sm:$0xff]
    %v489 = vld [vmem:[#allocation11 + $0x160] sm:$0xff]
    %v490 = vld [vmem:[#allocation11 + $0x168] sm:$0xff]
    %v491 = vld [vmem:[#allocation11 + $0x170] sm:$0xff]
    %v492 = vld [vmem:[#allocation11 + $0x178] sm:$0xff]
    %v493 = vld [vmem:[#allocation11 + $0x180] sm:$0xff]
    %v494 = vld [vmem:[#allocation11 + $0x188] sm:$0xff]
    %v495 = vld [vmem:[#allocation11 + $0x190] sm:$0xff]
    %v496 = vld [vmem:[#allocation11 + $0x198] sm:$0xff]
    %v497 = vld [vmem:[#allocation11 + $0x1a0] sm:$0xff]
    %v498 = vld [vmem:[#allocation11 + $0x1a8] sm:$0xff]
    %v499 = vld [vmem:[#allocation11 + $0x1b0] sm:$0xff]
    %v500 = vld [vmem:[#allocation11 + $0x1b8] sm:$0xff]
    %v501 = vld [vmem:[#allocation11 + $0x1c0] sm:$0xff]
    %v502 = vld [vmem:[#allocation11 + $0x1c8] sm:$0xff]
    %v503 = vld [vmem:[#allocation11 + $0x1d0] sm:$0xff]
    %v504 = vld [vmem:[#allocation11 + $0x1d8] sm:$0xff]
    %v505 = vld [vmem:[#allocation11 + $0x1e0] sm:$0xff]
    %v506 = vld [vmem:[#allocation11 + $0x1e8] sm:$0xff]
    %v507 = vld [vmem:[#allocation11 + $0x1f0] sm:$0xff]
    %v508 = vld [vmem:[#allocation11 + $0x1f8] sm:$0xff]
    %v509 = vld [vmem:[%s6] sm:$0xf]
    %v511 = vperm.slane %v509, 0
    %v512 = vperm.slane %v509, 1
    %v513 = vperm.slane %v509, 2
    %v514 = vperm.slane %v509, 3
    %v583 = vunpack.c.l.b16 %v445
    %v584 = vunpack.c.h.b16 %v445
    %v585 = vunpack.c.l.b16 %v446
    %v586 = vunpack.c.h.b16 %v446
    %v587 = vunpack.c.l.b16 %v447
    %v588 = vunpack.c.h.b16 %v447
    %v589 = vunpack.c.l.b16 %v448
    %v590 = vunpack.c.h.b16 %v448
    %v591 = vunpack.c.l.b16 %v449
    %v592 = vunpack.c.h.b16 %v449
    %v593 = vunpack.c.l.b16 %v450
    %v594 = vunpack.c.h.b16 %v450
    %v595 = vunpack.c.l.b16 %v451
    %v596 = vunpack.c.h.b16 %v451
    %v597 = vunpack.c.l.b16 %v452
    %v598 = vunpack.c.h.b16 %v452
    %v599 = vunpack.c.l.b16 %v453
    %v600 = vunpack.c.h.b16 %v453
    %v601 = vunpack.c.l.b16 %v454
    %v602 = vunpack.c.h.b16 %v454
    %v603 = vunpack.c.l.b16 %v455
    %v604 = vunpack.c.h.b16 %v455
    %v605 = vunpack.c.l.b16 %v456
    %v606 = vunpack.c.h.b16 %v456
    %v607 = vunpack.c.l.b16 %v457
    %v608 = vunpack.c.h.b16 %v457
    %v609 = vunpack.c.l.b16 %v458
    %v610 = vunpack.c.h.b16 %v458
    %v611 = vunpack.c.l.b16 %v459
    %v612 = vunpack.c.h.b16 %v459
    %v613 = vunpack.c.l.b16 %v460
    %v614 = vunpack.c.h.b16 %v460
    %v615 = vunpack.c.l.b16 %v461
    %v616 = vunpack.c.h.b16 %v461
    %v617 = vunpack.c.l.b16 %v462
    %v618 = vunpack.c.h.b16 %v462
    %v619 = vunpack.c.l.b16 %v463
    %v620 = vunpack.c.h.b16 %v463
    %v621 = vunpack.c.l.b16 %v464
    %v622 = vunpack.c.h.b16 %v464
    %v623 = vunpack.c.l.b16 %v465
    %v624 = vunpack.c.h.b16 %v465
    %v625 = vunpack.c.l.b16 %v466
    %v626 = vunpack.c.h.b16 %v466
    %v627 = vunpack.c.l.b16 %v467
    %v628 = vunpack.c.h.b16 %v467
    %v629 = vunpack.c.l.b16 %v468
    %v630 = vunpack.c.h.b16 %v468
    %v631 = vunpack.c.l.b16 %v469
    %v632 = vunpack.c.h.b16 %v469
    %v633 = vunpack.c.l.b16 %v470
    %v634 = vunpack.c.h.b16 %v470
    %v635 = vunpack.c.l.b16 %v471
    %v636 = vunpack.c.h.b16 %v471
    %v637 = vunpack.c.l.b16 %v472
    %v638 = vunpack.c.h.b16 %v472
    %v639 = vunpack.c.l.b16 %v473
    %v640 = vunpack.c.h.b16 %v473
    %v641 = vunpack.c.l.b16 %v474
    %v642 = vunpack.c.h.b16 %v474
    %v643 = vunpack.c.l.b16 %v475
    %v644 = vunpack.c.h.b16 %v475
    %v645 = vunpack.c.l.b16 %v476
    %v646 = vunpack.c.h.b16 %v476
    %v647 = vunpack.c.l.b16 %v477
    %v648 = vunpack.c.h.b16 %v477
    %v649 = vunpack.c.l.b16 %v478
    %v650 = vunpack.c.h.b16 %v478
    %v651 = vunpack.c.l.b16 %v479
    %v652 = vunpack.c.h.b16 %v479
    %v653 = vunpack.c.l.b16 %v480
    %v654 = vunpack.c.h.b16 %v480
    %v655 = vunpack.c.l.b16 %v481
    %v656 = vunpack.c.h.b16 %v481
    %v657 = vunpack.c.l.b16 %v482
    %v658 = vunpack.c.h.b16 %v482
    %v659 = vunpack.c.l.b16 %v483
    %v660 = vunpack.c.h.b16 %v483
    %v661 = vunpack.c.l.b16 %v484
    %v662 = vunpack.c.h.b16 %v484
    %v663 = vunpack.c.l.b16 %v485
    %v664 = vunpack.c.h.b16 %v485
    %v665 = vunpack.c.l.b16 %v486
    %v666 = vunpack.c.h.b16 %v486
    %v667 = vunpack.c.l.b16 %v487
    %v668 = vunpack.c.h.b16 %v487
    %v669 = vunpack.c.l.b16 %v488
    %v670 = vunpack.c.h.b16 %v488
    %v671 = vunpack.c.l.b16 %v489
    %v672 = vunpack.c.h.b16 %v489
    %v673 = vunpack.c.l.b16 %v490
    %v674 = vunpack.c.h.b16 %v490
    %v675 = vunpack.c.l.b16 %v491
    %v676 = vunpack.c.h.b16 %v491
    %v677 = vunpack.c.l.b16 %v492
    %v678 = vunpack.c.h.b16 %v492
    %v679 = vunpack.c.l.b16 %v493
    %v680 = vunpack.c.h.b16 %v493
    %v681 = vunpack.c.l.b16 %v494
    %v682 = vunpack.c.h.b16 %v494
    %v683 = vunpack.c.l.b16 %v495
    %v684 = vunpack.c.h.b16 %v495
    %v685 = vunpack.c.l.b16 %v496
    %v686 = vunpack.c.h.b16 %v496
    %v687 = vunpack.c.l.b16 %v497
    %v688 = vunpack.c.h.b16 %v497
    %v689 = vunpack.c.l.b16 %v498
    %v690 = vunpack.c.h.b16 %v498
    %v691 = vunpack.c.l.b16 %v499
    %v692 = vunpack.c.h.b16 %v499
    %v693 = vunpack.c.l.b16 %v500
    %v694 = vunpack.c.h.b16 %v500
    %v695 = vunpack.c.l.b16 %v501
    %v696 = vunpack.c.h.b16 %v501
    %v697 = vunpack.c.l.b16 %v502
    %v698 = vunpack.c.h.b16 %v502
    %v699 = vunpack.c.l.b16 %v503
    %v700 = vunpack.c.h.b16 %v503
    %v701 = vunpack.c.l.b16 %v504
    %v702 = vunpack.c.h.b16 %v504
    %v703 = vunpack.c.l.b16 %v505
    %v704 = vunpack.c.h.b16 %v505
    %v705 = vunpack.c.l.b16 %v506
    %v706 = vunpack.c.h.b16 %v506
    %v707 = vunpack.c.l.b16 %v507
    %v708 = vunpack.c.h.b16 %v507
    %v709 = vunpack.c.l.b16 %v508
    %v710 = vunpack.c.h.b16 %v508
    %v711 = vpack.c.b16 %v587, %v583
    %v712 = vpack.c.b16 %v588, %v584
    %v713 = vpack.c.b16 %v589, %v585
    %v714 = vpack.c.b16 %v590, %v586
    %v715 = vpack.c.b16 %v595, %v591
    %v716 = vpack.c.b16 %v596, %v592
    %v717 = vpack.c.b16 %v597, %v593
    %v718 = vpack.c.b16 %v598, %v594
    %v719 = vpack.c.b16 %v603, %v599
    %v720 = vpack.c.b16 %v604, %v600
    %v721 = vpack.c.b16 %v605, %v601
    %v722 = vpack.c.b16 %v606, %v602
    %v723 = vpack.c.b16 %v611, %v607
    %v724 = vpack.c.b16 %v612, %v608
    %v725 = vpack.c.b16 %v613, %v609
    %v726 = vpack.c.b16 %v614, %v610
    %v727 = vpack.c.b16 %v619, %v615
    %v728 = vpack.c.b16 %v620, %v616
    %v729 = vpack.c.b16 %v621, %v617
    %v730 = vpack.c.b16 %v622, %v618
    %v731 = vpack.c.b16 %v627, %v623
    %v732 = vpack.c.b16 %v628, %v624
    %v733 = vpack.c.b16 %v629, %v625
    %v734 = vpack.c.b16 %v630, %v626
    %v735 = vpack.c.b16 %v635, %v631
    %v736 = vpack.c.b16 %v636, %v632
    %v737 = vpack.c.b16 %v637, %v633
    %v738 = vpack.c.b16 %v638, %v634
    %v739 = vpack.c.b16 %v643, %v639
    %v740 = vpack.c.b16 %v644, %v640
    %v741 = vpack.c.b16 %v645, %v641
    %v742 = vpack.c.b16 %v646, %v642
    %v743 = vpack.c.b16 %v651, %v647
    %v744 = vpack.c.b16 %v652, %v648
    %v745 = vpack.c.b16 %v653, %v649
    %v746 = vpack.c.b16 %v654, %v650
    %v747 = vpack.c.b16 %v659, %v655
    %v748 = vpack.c.b16 %v660, %v656
    %v749 = vpack.c.b16 %v661, %v657
    %v750 = vpack.c.b16 %v662, %v658
    %v751 = vpack.c.b16 %v667, %v663
    %v752 = vpack.c.b16 %v668, %v664
    %v753 = vpack.c.b16 %v669, %v665
    %v754 = vpack.c.b16 %v670, %v666
    %v755 = vpack.c.b16 %v675, %v671
    %v756 = vpack.c.b16 %v676, %v672
    %v757 = vpack.c.b16 %v677, %v673
    %v758 = vpack.c.b16 %v678, %v674
    %v759 = vpack.c.b16 %v683, %v679
    %v760 = vpack.c.b16 %v684, %v680
    %v761 = vpack.c.b16 %v685, %v681
    %v762 = vpack.c.b16 %v686, %v682
    %v763 = vpack.c.b16 %v691, %v687
    %v764 = vpack.c.b16 %v692, %v688
    %v765 = vpack.c.b16 %v693, %v689
    %v766 = vpack.c.b16 %v694, %v690
    %v767 = vpack.c.b16 %v699, %v695
    %v768 = vpack.c.b16 %v700, %v696
    %v769 = vpack.c.b16 %v701, %v697
    %v770 = vpack.c.b16 %v702, %v698
    %v771 = vpack.c.b16 %v707, %v703
    %v772 = vpack.c.b16 %v708, %v704
    %v773 = vpack.c.b16 %v709, %v705
    %v774 = vpack.c.b16 %v710, %v706
    %839 = vmatpush.bf16.msra.mxu0 %v739
    %840 = vmatpush.bf16.msra.mxu0 %v735
    %841 = vmatpush.bf16.msra.mxu0 %v731
    %842 = vmatpush.bf16.msra.mxu0 %v727
    %843 = vmatpush.bf16.msra.mxu0 %v723
    %844 = vmatpush.bf16.msra.mxu0 %v719
    %845 = vmatpush.bf16.msra.mxu0 %v715
    %846 = vmatpush.bf16.msra.mxu0 %v711
    %847 = vmatmul.bf16.gmra.mxu0 %v443
    %v848 = vpop.f32.mrf.mxu0
    %v849 = vadd.f32 %v511, %v848
    %v850 = vpop.f32.mrf.mxu0
    %851 = vdwg.mxu0
    %852 = vmatpush.bf16.msra.mxu0 %v771
    %853 = vmatpush.bf16.msra.mxu0 %v767
    %854 = vmatpush.bf16.msra.mxu0 %v763
    %855 = vmatpush.bf16.msra.mxu0 %v759
    %856 = vmatpush.bf16.msra.mxu0 %v755
    %857 = vmatpush.bf16.msra.mxu0 %v751
    %858 = vmatpush.bf16.msra.mxu0 %v747
    %859 = vmatpush.bf16.msra.mxu0 %v743
    %860 = vmatmul.bf16.gmra.mxu0 %v444
    %v861 = vpop.f32.mrf.mxu0
    %v862 = vadd.f32 %v849, %v861
    %v863 = vpop.f32.mrf.mxu0
    %864 = vdwg.mxu0
    %865 = vmatpush.bf16.msra.mxu0 %v740
    %866 = vmatpush.bf16.msra.mxu0 %v736
    %867 = vmatpush.bf16.msra.mxu0 %v732
    %868 = vmatpush.bf16.msra.mxu0 %v728
    %869 = vmatpush.bf16.msra.mxu0 %v724
    %870 = vmatpush.bf16.msra.mxu0 %v720
    %871 = vmatpush.bf16.msra.mxu0 %v716
    %872 = vmatpush.bf16.msra.mxu0 %v712
    %873 = vmatmul.bf16.gmra.mxu0 %v443
    %v874 = vpop.f32.mrf.mxu0
    %v875 = vadd.f32 %v512, %v874
    %v876 = vpop.f32.mrf.mxu0
    %877 = vdwg.mxu0
    %878 = vmatpush.bf16.msra.mxu0 %v772
    %879 = vmatpush.bf16.msra.mxu0 %v768
    %880 = vmatpush.bf16.msra.mxu0 %v764
    %881 = vmatpush.bf16.msra.mxu0 %v760
    %882 = vmatpush.bf16.msra.mxu0 %v756
    %883 = vmatpush.bf16.msra.mxu0 %v752
    %884 = vmatpush.bf16.msra.mxu0 %v748
    %885 = vmatpush.bf16.msra.mxu0 %v744
    %886 = vmatmul.bf16.gmra.mxu0 %v444
    %v887 = vpop.f32.mrf.mxu0
    %v888 = vadd.f32 %v875, %v887
    %v889 = vpop.f32.mrf.mxu0
    %890 = vdwg.mxu0
    %891 = vmatpush.bf16.msra.mxu0 %v741
    %892 = vmatpush.bf16.msra.mxu0 %v737
    %893 = vmatpush.bf16.msra.mxu0 %v733
    %894 = vmatpush.bf16.msra.mxu0 %v729
    %895 = vmatpush.bf16.msra.mxu0 %v725
    %896 = vmatpush.bf16.msra.mxu0 %v721
    %897 = vmatpush.bf16.msra.mxu0 %v717
    %898 = vmatpush.bf16.msra.mxu0 %v713
    %899 = vmatmul.bf16.gmra.mxu0 %v443
    %v900 = vpop.f32.mrf.mxu0
    %v901 = vadd.f32 %v513, %v900
    %v902 = vpop.f32.mrf.mxu0
    %903 = vdwg.mxu0
    %904 = vmatpush.bf16.msra.mxu0 %v773
    %905 = vmatpush.bf16.msra.mxu0 %v769
    %906 = vmatpush.bf16.msra.mxu0 %v765
    %907 = vmatpush.bf16.msra.mxu0 %v761
    %908 = vmatpush.bf16.msra.mxu0 %v757
    %909 = vmatpush.bf16.msra.mxu0 %v753
    %910 = vmatpush.bf16.msra.mxu0 %v749
    %911 = vmatpush.bf16.msra.mxu0 %v745
    %912 = vmatmul.bf16.gmra.mxu0 %v444
    %v913 = vpop.f32.mrf.mxu0
    %v914 = vadd.f32 %v901, %v913
    %v915 = vpop.f32.mrf.mxu0
    %916 = vdwg.mxu0
    %917 = vmatpush.bf16.msra.mxu0 %v742
    %918 = vmatpush.bf16.msra.mxu0 %v738
    %919 = vmatpush.bf16.msra.mxu0 %v734
    %920 = vmatpush.bf16.msra.mxu0 %v730
    %921 = vmatpush.bf16.msra.mxu0 %v726
    %922 = vmatpush.bf16.msra.mxu0 %v722
    %923 = vmatpush.bf16.msra.mxu0 %v718
    %924 = vmatpush.bf16.msra.mxu0 %v714
    %925 = vmatmul.bf16.gmra.mxu0 %v443
    %v926 = vpop.f32.mrf.mxu0
    %v927 = vadd.f32 %v514, %v926
    %v928 = vpop.f32.mrf.mxu0
    %929 = vdwg.mxu0
    %930 = vmatpush.bf16.msra.mxu0 %v774
    %931 = vmatpush.bf16.msra.mxu0 %v770
    %932 = vmatpush.bf16.msra.mxu0 %v766
    %933 = vmatpush.bf16.msra.mxu0 %v762
    %934 = vmatpush.bf16.msra.mxu0 %v758
    %935 = vmatpush.bf16.msra.mxu0 %v754
    %936 = vmatpush.bf16.msra.mxu0 %v750
    %937 = vmatpush.bf16.msra.mxu0 %v746
    %938 = vmatmul.bf16.gmra.mxu0 %v444
    %v939 = vpop.f32.mrf.mxu0
    %v940 = vadd.f32 %v927, %v939
    %v941 = vpop.f32.mrf.mxu0
    %942 = vdwg.mxu0
    %v943 = vmax.f32 %v862, 0.0
    %v944 = vmax.f32 %v888, 0.0
    %v945 = vmax.f32 %v914, 0.0
    %v946 = vmax.f32 %v940, 0.0
    %v947 = vpack.c.bf16 %v943, %v943
    %v948 = vpack.c.bf16 %v944, %v944
    %v949 = vpack.c.bf16 %v945, %v945
    %v950 = vpack.c.bf16 %v946, %v946
    %v951 = vld [vmem:[#allocation13] sm:$0xf]
    %v952 = vld [vmem:[#allocation13 + $0x4] sm:$0xf]
    %v953 = vld [vmem:[#allocation13 + $0x8] sm:$0xf]
    %v954 = vld [vmem:[#allocation13 + $0xc] sm:$0xf]
    %v955 = vld [vmem:[#allocation13 + $0x10] sm:$0xf]
    %v956 = vld [vmem:[#allocation13 + $0x14] sm:$0xf]
    %v957 = vld [vmem:[#allocation13 + $0x18] sm:$0xf]
    %v958 = vld [vmem:[#allocation13 + $0x1c] sm:$0xf]
    %v959 = vld [vmem:[#allocation13 + $0x20] sm:$0xf]
    %v960 = vld [vmem:[#allocation13 + $0x24] sm:$0xf]
    %v961 = vld [vmem:[#allocation13 + $0x28] sm:$0xf]
    %v962 = vld [vmem:[#allocation13 + $0x2c] sm:$0xf]
    %v963 = vld [vmem:[#allocation13 + $0x30] sm:$0xf]
    %v964 = vld [vmem:[#allocation13 + $0x34] sm:$0xf]
    %v965 = vld [vmem:[#allocation13 + $0x38] sm:$0xf]
    %v966 = vld [vmem:[#allocation13 + $0x3c] sm:$0xf]
    %v967 = vld [vmem:[#allocation13 + $0x40] sm:$0xf]
    %v968 = vld [vmem:[#allocation13 + $0x44] sm:$0xf]
    %v969 = vld [vmem:[#allocation13 + $0x48] sm:$0xf]
    %v970 = vld [vmem:[#allocation13 + $0x4c] sm:$0xf]
    %v971 = vld [vmem:[#allocation13 + $0x50] sm:$0xf]
    %v972 = vld [vmem:[#allocation13 + $0x54] sm:$0xf]
    %v973 = vld [vmem:[#allocation13 + $0x58] sm:$0xf]
    %v974 = vld [vmem:[#allocation13 + $0x5c] sm:$0xf]
    %v975 = vld [vmem:[#allocation13 + $0x60] sm:$0xf]
    %v976 = vld [vmem:[#allocation13 + $0x64] sm:$0xf]
    %v977 = vld [vmem:[#allocation13 + $0x68] sm:$0xf]
    %v978 = vld [vmem:[#allocation13 + $0x6c] sm:$0xf]
    %v979 = vld [vmem:[#allocation13 + $0x70] sm:$0xf]
    %v980 = vld [vmem:[#allocation13 + $0x74] sm:$0xf]
    %v981 = vld [vmem:[#allocation13 + $0x78] sm:$0xf]
    %v982 = vld [vmem:[#allocation13 + $0x7c] sm:$0xf]
    %v983 = vld [vmem:[#allocation13 + $0x80] sm:$0xf]
    %v984 = vld [vmem:[#allocation13 + $0x84] sm:$0xf]
    %v985 = vld [vmem:[#allocation13 + $0x88] sm:$0xf]
    %v986 = vld [vmem:[#allocation13 + $0x8c] sm:$0xf]
    %v987 = vld [vmem:[#allocation13 + $0x90] sm:$0xf]
    %v988 = vld [vmem:[#allocation13 + $0x94] sm:$0xf]
    %v989 = vld [vmem:[#allocation13 + $0x98] sm:$0xf]
    %v990 = vld [vmem:[#allocation13 + $0x9c] sm:$0xf]
    %v991 = vld [vmem:[#allocation13 + $0xa0] sm:$0xf]
    %v992 = vld [vmem:[#allocation13 + $0xa4] sm:$0xf]
    %v993 = vld [vmem:[#allocation13 + $0xa8] sm:$0xf]
    %v994 = vld [vmem:[#allocation13 + $0xac] sm:$0xf]
    %v995 = vld [vmem:[#allocation13 + $0xb0] sm:$0xf]
    %v996 = vld [vmem:[#allocation13 + $0xb4] sm:$0xf]
    %v997 = vld [vmem:[#allocation13 + $0xb8] sm:$0xf]
    %v998 = vld [vmem:[#allocation13 + $0xbc] sm:$0xf]
    %v999 = vld [vmem:[#allocation13 + $0xc0] sm:$0xf]
    %v1000 = vld [vmem:[#allocation13 + $0xc4] sm:$0xf]
    %v1001 = vld [vmem:[#allocation13 + $0xc8] sm:$0xf]
    %v1002 = vld [vmem:[#allocation13 + $0xcc] sm:$0xf]
    %v1003 = vld [vmem:[#allocation13 + $0xd0] sm:$0xf]
    %v1004 = vld [vmem:[#allocation13 + $0xd4] sm:$0xf]
    %v1005 = vld [vmem:[#allocation13 + $0xd8] sm:$0xf]
    %v1006 = vld [vmem:[#allocation13 + $0xdc] sm:$0xf]
    %v1007 = vld [vmem:[#allocation13 + $0xe0] sm:$0xf]
    %v1008 = vld [vmem:[#allocation13 + $0xe4] sm:$0xf]
    %v1009 = vld [vmem:[#allocation13 + $0xe8] sm:$0xf]
    %v1010 = vld [vmem:[#allocation13 + $0xec] sm:$0xf]
    %v1011 = vld [vmem:[#allocation13 + $0xf0] sm:$0xf]
    %v1012 = vld [vmem:[#allocation13 + $0xf4] sm:$0xf]
    %v1013 = vld [vmem:[#allocation13 + $0xf8] sm:$0xf]
    %v1014 = vld [vmem:[#allocation13 + $0xfc] sm:$0xf]
    %v1015 = vld [vmem:[%s8] sm:$0x1]
    %v1017 = vperm.slane %v1015, 0
    %v1083 = vunpack.c.l.b16 %v951
    %v1084 = vunpack.c.l.b16 %v952
    %v1085 = vunpack.c.l.b16 %v953
    %v1086 = vunpack.c.l.b16 %v954
    %v1087 = vunpack.c.l.b16 %v955
    %v1088 = vunpack.c.l.b16 %v956
    %v1089 = vunpack.c.l.b16 %v957
    %v1090 = vunpack.c.l.b16 %v958
    %v1091 = vunpack.c.l.b16 %v959
    %v1092 = vunpack.c.l.b16 %v960
    %v1093 = vunpack.c.l.b16 %v961
    %v1094 = vunpack.c.l.b16 %v962
    %v1095 = vunpack.c.l.b16 %v963
    %v1096 = vunpack.c.l.b16 %v964
    %v1097 = vunpack.c.l.b16 %v965
    %v1098 = vunpack.c.l.b16 %v966
    %v1099 = vunpack.c.l.b16 %v967
    %v1100 = vunpack.c.l.b16 %v968
    %v1101 = vunpack.c.l.b16 %v969
    %v1102 = vunpack.c.l.b16 %v970
    %v1103 = vunpack.c.l.b16 %v971
    %v1104 = vunpack.c.l.b16 %v972
    %v1105 = vunpack.c.l.b16 %v973
    %v1106 = vunpack.c.l.b16 %v974
    %v1107 = vunpack.c.l.b16 %v975
    %v1108 = vunpack.c.l.b16 %v976
    %v1109 = vunpack.c.l.b16 %v977
    %v1110 = vunpack.c.l.b16 %v978
    %v1111 = vunpack.c.l.b16 %v979
    %v1112 = vunpack.c.l.b16 %v980
    %v1113 = vunpack.c.l.b16 %v981
    %v1114 = vunpack.c.l.b16 %v982
    %v1115 = vunpack.c.l.b16 %v983
    %v1116 = vunpack.c.l.b16 %v984
    %v1117 = vunpack.c.l.b16 %v985
    %v1118 = vunpack.c.l.b16 %v986
    %v1119 = vunpack.c.l.b16 %v987
    %v1120 = vunpack.c.l.b16 %v988
    %v1121 = vunpack.c.l.b16 %v989
    %v1122 = vunpack.c.l.b16 %v990
    %v1123 = vunpack.c.l.b16 %v991
    %v1124 = vunpack.c.l.b16 %v992
    %v1125 = vunpack.c.l.b16 %v993
    %v1126 = vunpack.c.l.b16 %v994
    %v1127 = vunpack.c.l.b16 %v995
    %v1128 = vunpack.c.l.b16 %v996
    %v1129 = vunpack.c.l.b16 %v997
    %v1130 = vunpack.c.l.b16 %v998
    %v1131 = vunpack.c.l.b16 %v999
    %v1132 = vunpack.c.l.b16 %v1000
    %v1133 = vunpack.c.l.b16 %v1001
    %v1134 = vunpack.c.l.b16 %v1002
    %v1135 = vunpack.c.l.b16 %v1003
    %v1136 = vunpack.c.l.b16 %v1004
    %v1137 = vunpack.c.l.b16 %v1005
    %v1138 = vunpack.c.l.b16 %v1006
    %v1139 = vunpack.c.l.b16 %v1007
    %v1140 = vunpack.c.l.b16 %v1008
    %v1141 = vunpack.c.l.b16 %v1009
    %v1142 = vunpack.c.l.b16 %v1010
    %v1143 = vunpack.c.l.b16 %v1011
    %v1144 = vunpack.c.l.b16 %v1012
    %v1145 = vunpack.c.l.b16 %v1013
    %v1146 = vunpack.c.l.b16 %v1014
    %v1147 = vpack.c.b16 %v1084, %v1083
    %v1148 = vpack.c.b16 %v1086, %v1085
    %v1149 = vpack.c.b16 %v1088, %v1087
    %v1150 = vpack.c.b16 %v1090, %v1089
    %v1151 = vpack.c.b16 %v1092, %v1091
    %v1152 = vpack.c.b16 %v1094, %v1093
    %v1153 = vpack.c.b16 %v1096, %v1095
    %v1154 = vpack.c.b16 %v1098, %v1097
    %v1155 = vpack.c.b16 %v1100, %v1099
    %v1156 = vpack.c.b16 %v1102, %v1101
    %v1157 = vpack.c.b16 %v1104, %v1103
    %v1158 = vpack.c.b16 %v1106, %v1105
    %v1159 = vpack.c.b16 %v1108, %v1107
    %v1160 = vpack.c.b16 %v1110, %v1109
    %v1161 = vpack.c.b16 %v1112, %v1111
    %v1162 = vpack.c.b16 %v1114, %v1113
    %v1163 = vpack.c.b16 %v1116, %v1115
    %v1164 = vpack.c.b16 %v1118, %v1117
    %v1165 = vpack.c.b16 %v1120, %v1119
    %v1166 = vpack.c.b16 %v1122, %v1121
    %v1167 = vpack.c.b16 %v1124, %v1123
    %v1168 = vpack.c.b16 %v1126, %v1125
    %v1169 = vpack.c.b16 %v1128, %v1127
    %v1170 = vpack.c.b16 %v1130, %v1129
    %v1171 = vpack.c.b16 %v1132, %v1131
    %v1172 = vpack.c.b16 %v1134, %v1133
    %v1173 = vpack.c.b16 %v1136, %v1135
    %v1174 = vpack.c.b16 %v1138, %v1137
    %v1175 = vpack.c.b16 %v1140, %v1139
    %v1176 = vpack.c.b16 %v1142, %v1141
    %v1177 = vpack.c.b16 %v1144, %v1143
    %v1178 = vpack.c.b16 %v1146, %v1145
    %1211 = vmatpush.bf16.msra.mxu0 %v1154
    %1212 = vmatpush.bf16.msra.mxu0 %v1153
    %1213 = vmatpush.bf16.msra.mxu0 %v1152
    %1214 = vmatpush.bf16.msra.mxu0 %v1151
    %1215 = vmatpush.bf16.msra.mxu0 %v1150
    %1216 = vmatpush.bf16.msra.mxu0 %v1149
    %1217 = vmatpush.bf16.msra.mxu0 %v1148
    %1218 = vmatpush.bf16.msra.mxu0 %v1147
    %1219 = vmatmul.bf16.gmra.mxu0 %v947
    %v1220 = vpop.f32.mrf.mxu0
    %v1221 = vadd.f32 %v1017, %v1220
    %v1222 = vpop.f32.mrf.mxu0
    %1223 = vdwg.mxu0
    %1224 = vmatpush.bf16.msra.mxu0 %v1162
    %1225 = vmatpush.bf16.msra.mxu0 %v1161
    %1226 = vmatpush.bf16.msra.mxu0 %v1160
    %1227 = vmatpush.bf16.msra.mxu0 %v1159
    %1228 = vmatpush.bf16.msra.mxu0 %v1158
    %1229 = vmatpush.bf16.msra.mxu0 %v1157
    %1230 = vmatpush.bf16.msra.mxu0 %v1156
    %1231 = vmatpush.bf16.msra.mxu0 %v1155
    %1232 = vmatmul.bf16.gmra.mxu0 %v948
    %v1233 = vpop.f32.mrf.mxu0
    %v1234 = vadd.f32 %v1221, %v1233
    %v1235 = vpop.f32.mrf.mxu0
    %1236 = vdwg.mxu0
    %1237 = vmatpush.bf16.msra.mxu0 %v1170
    %1238 = vmatpush.bf16.msra.mxu0 %v1169
    %1239 = vmatpush.bf16.msra.mxu0 %v1168
    %1240 = vmatpush.bf16.msra.mxu0 %v1167
    %1241 = vmatpush.bf16.msra.mxu0 %v1166
    %1242 = vmatpush.bf16.msra.mxu0 %v1165
    %1243 = vmatpush.bf16.msra.mxu0 %v1164
    %1244 = vmatpush.bf16.msra.mxu0 %v1163
    %1245 = vmatmul.bf16.gmra.mxu0 %v949
    %v1246 = vpop.f32.mrf.mxu0
    %v1247 = vadd.f32 %v1234, %v1246
    %v1248 = vpop.f32.mrf.mxu0
    %1249 = vdwg.mxu0
    %1250 = vmatpush.bf16.msra.mxu0 %v1178
    %1251 = vmatpush.bf16.msra.mxu0 %v1177
    %1252 = vmatpush.bf16.msra.mxu0 %v1176
    %1253 = vmatpush.bf16.msra.mxu0 %v1175
    %1254 = vmatpush.bf16.msra.mxu0 %v1174
    %1255 = vmatpush.bf16.msra.mxu0 %v1173
    %1256 = vmatpush.bf16.msra.mxu0 %v1172
    %1257 = vmatpush.bf16.msra.mxu0 %v1171
    %1258 = vmatmul.bf16.gmra.mxu0 %v950
    %v1259 = vpop.f32.mrf.mxu0
    %v1260 = vadd.f32 %v1247, %v1259
    %v1261 = vpop.f32.mrf.mxu0
    %1262 = vdwg.mxu0
    %1263 = vst [vmem:[#allocation14] sm:$0xff] %v1260
    // Predicated region
    $region66: #{tpu_custom_call.1} parent=1 // pred_check
      _
    $region67: #{tpu_custom_call.1} parent=1 // pred_check_branch
      %1265 = sbr.rel (0) target = $region69
    $region68: #{tpu_custom_call.1} parent=1 // pred_region
      %1267 = vsyncadd [#allocation4], 0
      %s1269 = sshll.u32 [#allocation14], 4
      %s1270 = int_to_ptr.vmem [resolvable:$true] %s1269
      %s1271 = sshll.u32 %s9, 4
      %s1272 = int_to_ptr.hbm [resolvable:$true] %s1271
      %1274 = dma.vmem_to_hbm [thread:$0]  %s1270, 128, %s1272, [#allocation4]
    $region69: #{tpu_custom_call.1} parent=1 // pred_fallthru
      _
    // Predicated region
    $region70: #{tpu_custom_call.1} parent=1 // pred_check
      _
    $region71: #{tpu_custom_call.1} parent=1 // pred_check_branch
      %1276 = sbr.rel (0) target = $region73
    $region72: #{tpu_custom_call.1} parent=1 // pred_region
      %1278 = dma.done [#allocation4], 128
    $region73: #{tpu_custom_call.1} parent=1 // pred_fallthru
      _
    %1279 = vsyncpa [#allocation3], 1
    %1280 = vsyncpa [#allocation6], 1
    %1281 = vsyncpa [#allocation9], 1
    %1282 = vsyncpa [#allocation12], 1
    %1283 = vsyncpa [#allocation4], 1

</llo_original>
